<compile_context>
chip_gen: v7x
topology: tpu7x:2x2x1
jax: 0.10.0
libtpu: 0.0.40
codegen_flags: <defaults>
</compile_context>

<pallas_src>
import functools

import jax
import jax.numpy as jnp
from jax.experimental import pallas as pl
from jax.experimental.pallas import tpu as pltpu


def _round_up(a: int, m: int) -> int:
    return ((a + m - 1) // m) * m


def _padded_bytes(shape, dtype) -> int:
    """VMEM bytes of one buffer of `shape`, including (sublane, 128) tile padding."""
    itemsize = jnp.dtype(dtype).itemsize
    sublane = {4: 8, 2: 16, 1: 32}.get(itemsize, 8)
    dims = list(shape)
    if len(dims) >= 1:
        dims[-1] = _round_up(int(dims[-1]), 128)
    if len(dims) >= 2:
        dims[-2] = _round_up(int(dims[-2]), sublane)
    n = 1
    for d in dims:
        n *= int(d)
    return n * itemsize


def _vmem_cap_bytes() -> int:
    """~50% of physical VMEM (v7x: 64 MiB/TC, v5e/v6e: 128 MiB); safe fallback."""
    try:
        phys = getattr(pltpu.get_tpu_info(), "vmem_capacity_bytes", None)
        if phys:
            return int(phys) // 2
    except Exception:
        pass
    return 32 * 1024 * 1024


# -----------------------------------------------------------------------------
# Small-feature path (in_size, hidden < 8): VPU-only, lane-dense (batch on lanes)
# -----------------------------------------------------------------------------
def _nn_small_kernel(xT_ref, w1_ref, w2_ref, yT_ref):
    """One batch-lane tile: y^T = W2 @ relu(W1 @ x^T), entirely on the VPU.

    xT_ref: (in, tb)  VMEM      w1_ref: (hidden, in)   SMEM
    yT_ref: (out2, tb) VMEM     w2_ref: (out2, hidden) SMEM
    """
    in_size = xT_ref.shape[0]
    hidden = w1_ref.shape[0]
    out2 = w2_ref.shape[0]

    xT = xT_ref[...].astype(jnp.float32)                        # (in, tb)

    # First linear + ReLU: h^T[j, :] = relu(sum_k W1[j, k] * x^T[k, :]).
    # SMEM scalar * vector broadcast multiply-adds -> VALU slots, no MXU push.
    h_rows = []
    for j in range(hidden):
        acc = w1_ref[j, 0] * xT[0:1, :]
        for k in range(1, in_size):
            acc = acc + w1_ref[j, k] * xT[k:k + 1, :]
        h_rows.append(jnp.maximum(acc, 0.0))                     # (1, tb)

    # Second linear (module returns y *before* relu2).
    y_rows = []
    for o in range(out2):
        acc = w2_ref[o, 0] * h_rows[0]
        for j in range(1, hidden):
            acc = acc + w2_ref[o, j] * h_rows[j]
        y_rows.append(acc)                                       # (1, tb)

    yT_ref[...] = jnp.concatenate(y_rows, axis=0).astype(yT_ref.dtype)


def _nn_forward_small(x, w1, w2, *, block_b=512):
    B, in_size = x.shape
    hidden = w1.shape[0]
    out2 = w2.shape[0]
    block_b = max(128, _round_up(block_b, 128))

    # Lane tile: multiple of 128 (lane-dense, unmasked stores) and at least two
    # grid steps when possible so v7x's second TensorCore is not left idle.
    if B <= 128:
        tb = B                                  # full-extent block: layout-legal
    else:
        tb = min(block_b, _round_up(pl.cdiv(B, 2), 128))
    grid = (pl.cdiv(B, tb),)

    xT = x.T                                    # (in, B); one-time layout transform

    est = (
        2 * _padded_bytes((in_size, tb), x.dtype)                  # streamed x^T tiles
        + 2 * _padded_bytes((out2, tb), x.dtype)                   # streamed y^T tiles
        + (hidden + out2) * _padded_bytes((1, tb), jnp.float32)    # f32 row temps
    )
    vmem_limit = int(min(max(2 * est, 4 << 20), _vmem_cap_bytes()))

    flops = 2 * B * (in_size * hidden + hidden * out2)
    dt = jnp.dtype(x.dtype).itemsize
    bytes_accessed = B * (in_size + out2) * dt + (in_size * hidden + hidden * out2) * 4

    yT = pl.pallas_call(
        _nn_small_kernel,
        out_shape=jax.ShapeDtypeStruct((out2, B), x.dtype),
        grid=grid,
        in_specs=[
            pl.BlockSpec((in_size, tb), lambda i: (0, i)),
            # Tiny weights live in SMEM and are read as scalars.
            pl.BlockSpec(memory_space=pltpu.MemorySpace.SMEM),
            pl.BlockSpec(memory_space=pltpu.MemorySpace.SMEM),
        ],
        out_specs=pl.BlockSpec((out2, tb), lambda i: (0, i)),
        compiler_params=pltpu.CompilerParams(
            dimension_semantics=("parallel",),
            vmem_limit_bytes=vmem_limit,
        ),
        cost_estimate=pl.CostEstimate(
            flops=flops, transcendentals=0, bytes_accessed=bytes_accessed
        ),
    )(xT, w1, w2)
    return yT.T                                  # back to the module's (B, out2) layout


# -----------------------------------------------------------------------------
# General path (contraction dims >= 8): batch-sublane tiles, MXU matmuls
# -----------------------------------------------------------------------------
def _nn_mxu_kernel(x_ref, w1t_ref, w2t_ref, y_ref):
    h = jnp.dot(x_ref[...], w1t_ref[...], preferred_element_type=jnp.float32)
    act = jnp.maximum(h, 0.0).astype(x_ref.dtype)   # bf16 in -> bf16 MXU operand
    y = jnp.dot(act, w2t_ref[...], preferred_element_type=jnp.float32)
    y_ref[...] = y.astype(y_ref.dtype)


def _nn_forward_mxu(x, w1, w2, *, block_m=512):
    B, in_size = x.shape
    hidden = w1.shape[0]
    out2 = w2.shape[0]
    # NOTE: at real sizes hoist these one-time transposes to parameter-load time.
    w1_t = w1.T                                  # (in, hidden)
    w2_t = w2.T                                  # (hidden, out2)

    if B <= block_m:
        tm = B
    else:
        tm = min(block_m, max(8, _round_up(pl.cdiv(B, 2), 8)))   # >= 2 grid steps
    grid = (pl.cdiv(B, tm),)

    est = (
        2 * _padded_bytes((tm, in_size), x.dtype)
        + 2 * _padded_bytes((tm, out2), x.dtype)
        + _padded_bytes((in_size, hidden), w1_t.dtype)
        + _padded_bytes((hidden, out2), w2_t.dtype)
        + _padded_bytes((tm, hidden), jnp.float32)
    )
    vmem_limit = int(min(max(2 * est, 8 << 20), _vmem_cap_bytes()))

    flops = 2 * B * (in_size * hidden + hidden * out2)
    dt = jnp.dtype(x.dtype).itemsize
    bytes_accessed = B * (in_size + out2) * dt + (in_size * hidden + hidden * out2) * dt

    # TODO(synk): at real hidden sizes add a K(hidden)-reduction grid axis with an
    # f32 accumulator scratch (zero at k==0, store at k==last, axis "arbitrary") so
    # the f32 intermediate is bounded by (tm, tk) instead of (tm, hidden).
    return pl.pallas_call(
        _nn_mxu_kernel,
        out_shape=jax.ShapeDtypeStruct((B, out2), x.dtype),
        grid=grid,
        in_specs=[
            pl.BlockSpec((tm, in_size), lambda i: (i, 0)),
            # Constant (0, 0) blocks: resident weights, single-buffered.
            pl.BlockSpec((in_size, hidden), lambda i: (0, 0),
                         pipeline_mode=pl.Buffered(1)),
            pl.BlockSpec((hidden, out2), lambda i: (0, 0),
                         pipeline_mode=pl.Buffered(1)),
        ],
        out_specs=pl.BlockSpec((tm, out2), lambda i: (i, 0)),
        compiler_params=pltpu.CompilerParams(
            dimension_semantics=("parallel",),
            vmem_limit_bytes=vmem_limit,
        ),
        cost_estimate=pl.CostEstimate(
            flops=flops, transcendentals=0, bytes_accessed=bytes_accessed
        ),
    )(x, w1_t, w2_t)


def nn_forward(x, w1, w2, *, block_b=512, block_m=512):
    """Forward of `NN`: y = relu(x @ W1^T) @ W2^T (returned pre-relu2).

    w1: (hidden, in_size), w2: (out2, hidden) in torch nn.Linear (out, in) layout.
    """
    B, in_size = x.shape
    hidden, in_w = w1.shape
    out2, hidden_w = w2.shape
    assert in_size == in_w and hidden == hidden_w
    if in_size < 8 and hidden < 8:
        # Contractions are MXU-padding-dominated -> VPU broadcast path.
        return _nn_forward_small(x, w1, w2, block_b=block_b)
    return _nn_forward_mxu(x, w1, w2, block_m=block_m)


if __name__ == "__main__":
    # Module __init__ hard-codes (NN(in_size=1, out_size=2) effectively):
    #   linear.weight  = [[1.], [1.]]          -> (hidden=2, in=1)
    #   linear2.weight = [[1., 1.], [1., 1.]]  -> (out2=2, hidden=2)
    w1 = jnp.array([[1.0], [1.0]], dtype=jnp.float32)
    w2 = jnp.array([[1.0, 1.0], [1.0, 1.0]], dtype=jnp.float32)

    batch = 256
    key = jax.random.PRNGKey(0)
    x = jax.random.normal(key, (batch, 1), dtype=jnp.float32)

    # block_b=128 -> two 128-lane tiles: lane-dense stores plus a 2-step grid
    # that exercises pipelining (and megacore sharding on v7x).
    fwd = jax.jit(functools.partial(nn_forward, block_b=128))
    y = jax.block_until_ready(fwd(x, w1, w2))

    # Pure-JAX reference of the torch forward (pre-relu2 output).
    ref = jnp.maximum(x @ w1.T, 0.0) @ w2.T
    assert y.shape == (batch, 2), y.shape
    assert jnp.allclose(y, ref, atol=1e-6), float(jnp.max(jnp.abs(y - ref)))

    print("KERNEL_OK")
</pallas_src>

<mosaic_0001>
module attributes {stable_mosaic.version = 11 : i64} {
  func.func @_nn_small_kernel(%arg0: i32, %arg1: memref<1x128xf32, #tpu.memory_space<vmem>>, %arg2: memref<2x1xf32, #tpu.memory_space<smem>>, %arg3: memref<2x2xf32, #tpu.memory_space<smem>>, %arg4: memref<2x128xf32, #tpu.memory_space<vmem>>) attributes {dimension_semantics = [#tpu.dimension_semantics<parallel>], iteration_bounds = array<i64: 2>, scalar_prefetch = 0 : i64, scratch_operands = 0 : i64, tpu.core_type = #tpu.core_type<tc>, window_params = [{transform_indices = @transform_0, window_bounds = array<i64: 1, 128>}, {transform_indices = @transform_1, window_bounds = array<i64: 2, 1>}, {transform_indices = @transform_2, window_bounds = array<i64: 2, 2>}, {transform_indices = @transform_3, window_bounds = array<i64: 2, 128>}]} {
    %c0 = arith.constant 0 : index
    %c0_0 = arith.constant 0 : index
    %0 = vector.load %arg1[%c0, %c0_0] : memref<1x128xf32, #tpu.memory_space<vmem>>, vector<1x128xf32>
    %c0_1 = arith.constant 0 : index
    %c0_2 = arith.constant 0 : index
    %1 = memref.load %arg2[%c0_1, %c0_2] : memref<2x1xf32, #tpu.memory_space<smem>>
    %2 = vector.broadcast %1 : f32 to vector<1x128xf32>
    %3 = arith.mulf %2, %0 : vector<1x128xf32>
    %cst = arith.constant 0.000000e+00 : f32
    %4 = vector.broadcast %cst : f32 to vector<1x128xf32>
    %5 = arith.maximumf %3, %4 : vector<1x128xf32>
    %c1 = arith.constant 1 : index
    %c0_3 = arith.constant 0 : index
    %6 = memref.load %arg2[%c1, %c0_3] : memref<2x1xf32, #tpu.memory_space<smem>>
    %7 = vector.broadcast %6 : f32 to vector<1x128xf32>
    %8 = arith.mulf %7, %0 : vector<1x128xf32>
    %cst_4 = arith.constant 0.000000e+00 : f32
    %9 = vector.broadcast %cst_4 : f32 to vector<1x128xf32>
    %10 = arith.maximumf %8, %9 : vector<1x128xf32>
    %c0_5 = arith.constant 0 : index
    %c0_6 = arith.constant 0 : index
    %11 = memref.load %arg3[%c0_5, %c0_6] : memref<2x2xf32, #tpu.memory_space<smem>>
    %12 = vector.broadcast %11 : f32 to vector<1x128xf32>
    %13 = arith.mulf %12, %5 : vector<1x128xf32>
    %c0_7 = arith.constant 0 : index
    %c1_8 = arith.constant 1 : index
    %14 = memref.load %arg3[%c0_7, %c1_8] : memref<2x2xf32, #tpu.memory_space<smem>>
    %15 = vector.broadcast %14 : f32 to vector<1x128xf32>
    %16 = arith.mulf %15, %10 : vector<1x128xf32>
    %17 = arith.addf %13, %16 : vector<1x128xf32>
    %c1_9 = arith.constant 1 : index
    %c0_10 = arith.constant 0 : index
    %18 = memref.load %arg3[%c1_9, %c0_10] : memref<2x2xf32, #tpu.memory_space<smem>>
    %19 = vector.broadcast %18 : f32 to vector<1x128xf32>
    %20 = arith.mulf %19, %5 : vector<1x128xf32>
    %c1_11 = arith.constant 1 : index
    %c1_12 = arith.constant 1 : index
    %21 = memref.load %arg3[%c1_11, %c1_12] : memref<2x2xf32, #tpu.memory_space<smem>>
    %22 = vector.broadcast %21 : f32 to vector<1x128xf32>
    %23 = arith.mulf %22, %10 : vector<1x128xf32>
    %24 = arith.addf %20, %23 : vector<1x128xf32>
    %25 = tpu.concatenate %17, %24 in 0 : vector<1x128xf32>, vector<1x128xf32> -> vector<2x128xf32>
    %c0_13 = arith.constant 0 : index
    %c0_14 = arith.constant 0 : index
    %26 = vector.load %arg4[%c0_13, %c0_14] : memref<2x128xf32, #tpu.memory_space<vmem>>, vector<2x128xf32>
    tpu.vector_store %arg4[%c0_13, %c0_14], %25 {strides = array<i32>} : memref<2x128xf32, #tpu.memory_space<vmem>>, vector<2x128xf32>,
    return
  }
  func.func @transform_0(%arg0: i32) -> (i32, i32) {
    %c0_i32 = arith.constant 0 : i32
    %c0_i32_0 = arith.constant 0 : i32
    return %c0_i32, %arg0 : i32, i32
  }
  func.func @transform_1(%arg0: i32) -> (i32, i32) {
    %c0_i32 = arith.constant 0 : i32
    %c0_i32_0 = arith.constant 0 : i32
    %c0_i32_1 = arith.constant 0 : i32
    return %c0_i32, %c0_i32_0 : i32, i32
  }
  func.func @transform_2(%arg0: i32) -> (i32, i32) {
    %c0_i32 = arith.constant 0 : i32
    %c0_i32_0 = arith.constant 0 : i32
    %c0_i32_1 = arith.constant 0 : i32
    return %c0_i32, %c0_i32_0 : i32, i32
  }
  func.func @transform_3(%arg0: i32) -> (i32, i32) {
    %c0_i32 = arith.constant 0 : i32
    %c0_i32_0 = arith.constant 0 : i32
    return %c0_i32, %arg0 : i32, i32
  }
}

</mosaic_0001>

<llo_original>
// kernel: nn_forward.1
$region0: #{nn_forward.1}
  #allocation0 [shape = 'u32[]', space=smem, size = 0x4, offset = 0x4, fixed_abs, tag = 'smem constant byte address 0x4 - core index']
  #allocation1 [shape = 'u32[144,128]{1,0:T(1,128)}', space=vmem, size = 0x12000, scoped, tag = 'internal scratch']
  %s0 = inlined_call_operand.vmem [shape: f32[1,256], index: 0, kind: input, shape index: {}]
  %s1 = inlined_call_operand.vmem [shape: f32[2,1], index: 1, kind: input, shape index: {}]
  %s2 = inlined_call_operand.vmem [shape: f32[2,2], index: 2, kind: input, shape index: {}]
  %s3 = inlined_call_operand.hbm [shape: f32[2,256], index: 3, kind: output, shape index: {}]
  %s4 = sld [smem:[#allocation0]]
  $region53: #{nn_forward.1} parent=0
    _
  %s6 = ssub.s32 1, %s4
  %s7 = scalar_select 0, %s6, %s4
  $region1: #{nn_forward.1} parent=0
    #allocation2 [shape = 'u8[1024]{0}', space=smem, size = 0x400, scoped, tag = 'input window, operand 1, single buffered']
    #allocation3 [shape = 's32[2]{0}', space=sflag, size = 0x8, scoped, tag = 'scoped memory for nn_forward.1']
    #allocation4 [shape = 's32[2]{0}', space=sflag, size = 0x8, scoped, tag = 'scoped memory for nn_forward.1']
    #allocation5 [shape = 'u8[1024]{0}', space=smem, size = 0x400, scoped, tag = 'input window, operand 2, single buffered']
    #allocation6 [shape = 's32[1]{0}', space=sflag, size = 0x4, scoped, tag = 'scoped memory for nn_forward.1']
    #allocation7 [shape = 'u8[2048]{0}', space=vmem, size = 0x800, scoped, tag = 'output window, operand 0']
    %8 = vsyncpa [#allocation4], 0
    %9 = vsyncpa [#allocation6], 0
    %10 = vsyncpa [#allocation3], 0
    %s11 = scalar_lea.sflag [#allocation3], 1
    %12 = vsyncpa %s11, 0
    loop: start=0, step=1, limit=4
    $region2: #{nn_forward.1} parent=1 // loop_pre_header
      _
    $region3: #{nn_forward.1} parent=1 // loop_header
      %s14 = sphi 0, %s18
      %p15 = scmp.ge.s32.totalorder %s14, 4
      %s24 = sphi 0, %s26
      %s27 = sphi 0, %s24
      %s28 = sphi 0, %s27
      %s44 = sphi 0, %s28
      %s48 = sphi 0, %s48
      %s50 = sphi 0, %s48
      %s51 = sphi 0, %s50
      %s65 = sphi 0, %s51
      %s69 = sphi 0, %s69
      %s71 = sphi 0, %s69
      %s72 = sphi 0, %s71
      %s86 = sphi 0, %s72
      %s92 = sphi 0, %s94
      %s95 = sphi 0, %s92
      %s96 = sphi 0, %s95
      %s112 = sphi 0, %s96
    $region4: #{nn_forward.1} parent=1 // loop_header_branch
      %17 = sbr.rel (%p15) target = $region8
    $region5: #{nn_forward.1} parent=1 // loop_body
      %s19 = ssub.s32 %s14, 1
      %s20 = ssub.s32 %s14, 2
      %s21 = sadd.s32 %s14, 1
      %s22 = ssub.s32 %s14, %s21
      %p23 = scmp.eq.s32.totalorder %s22, 0
      %s25 = sadd.s32 %s24, 1
      %s26 = scalar_select %p23, %s24, %s25
      %p29 = pneg %p23
      %p30 = scmp.eq.s32.totalorder %s14, 1
      %p31 = por %p29, %p30
      %p32 = scmp.ne.s32.totalorder %s24, %s27
      %p33 = scmp.eq.s32.totalorder %s14, 0
      %p34 = por %p32, %p33
      %p35 = scmp.ne.s32.totalorder %s24, %s27
      %p36 = scmp.eq.s32.totalorder %s19, 1
      %p37 = por %p35, %p36
      %p38 = scmp.ne.s32.totalorder %s27, %s28
      %p39 = scmp.eq.s32.totalorder %s19, 0
      %p40 = por %p38, %p39
      %p41 = scmp.ne.s32.totalorder %s27, %s28
      %p42 = scmp.eq.s32.totalorder %s20, 1
      %p43 = por %p41, %p42
      %p45 = scmp.ne.s32.totalorder %s28, %s44
      %p46 = scmp.eq.s32.totalorder %s20, 0
      %p47 = por %p45, %p46
      %s49 = sadd.s32 %s48, 1
      %p52 = scmp.eq.s32.totalorder %s14, 1
      %p53 = scmp.ne.s32.totalorder %s48, %s50
      %p54 = scmp.eq.s32.totalorder %s14, 0
      %p55 = por %p53, %p54
      %p56 = scmp.ne.s32.totalorder %s48, %s50
      %p57 = scmp.eq.s32.totalorder %s19, 1
      %p58 = por %p56, %p57
      %p59 = scmp.ne.s32.totalorder %s50, %s51
      %p60 = scmp.eq.s32.totalorder %s19, 0
      %p61 = por %p59, %p60
      %p62 = scmp.ne.s32.totalorder %s50, %s51
      %p63 = scmp.eq.s32.totalorder %s20, 1
      %p64 = por %p62, %p63
      %p66 = scmp.ne.s32.totalorder %s51, %s65
      %p67 = scmp.eq.s32.totalorder %s20, 0
      %p68 = por %p66, %p67
      %s70 = sadd.s32 %s69, 1
      %p73 = scmp.eq.s32.totalorder %s14, 1
      %p74 = scmp.ne.s32.totalorder %s69, %s71
      %p75 = scmp.eq.s32.totalorder %s14, 0
      %p76 = por %p74, %p75
      %p77 = scmp.ne.s32.totalorder %s69, %s71
      %p78 = scmp.eq.s32.totalorder %s19, 1
      %p79 = por %p77, %p78
      %p80 = scmp.ne.s32.totalorder %s71, %s72
      %p81 = scmp.eq.s32.totalorder %s19, 0
      %p82 = por %p80, %p81
      %p83 = scmp.ne.s32.totalorder %s71, %s72
      %p84 = scmp.eq.s32.totalorder %s20, 1
      %p85 = por %p83, %p84
      %p87 = scmp.ne.s32.totalorder %s72, %s86
      %p88 = scmp.eq.s32.totalorder %s20, 0
      %p89 = por %p87, %p88
      %s90 = ssub.s32 %s14, %s21
      %p91 = scmp.eq.s32.totalorder %s90, 0
      %s93 = sadd.s32 %s92, 1
      %s94 = scalar_select %p91, %s92, %s93
      %p97 = pneg %p91
      %p98 = scmp.eq.s32.totalorder %s14, 1
      %p99 = por %p97, %p98
      %p100 = scmp.ne.s32.totalorder %s92, %s95
      %p101 = scmp.eq.s32.totalorder %s14, 0
      %p102 = por %p100, %p101
      %p103 = scmp.ne.s32.totalorder %s92, %s95
      %p104 = scmp.eq.s32.totalorder %s19, 1
      %p105 = por %p103, %p104
      %p106 = scmp.ne.s32.totalorder %s95, %s96
      %p107 = scmp.eq.s32.totalorder %s19, 0
      %p108 = por %p106, %p107
      %p109 = scmp.ne.s32.totalorder %s95, %s96
      %p110 = scmp.eq.s32.totalorder %s20, 1
      %p111 = por %p109, %p110
      %p113 = scmp.ne.s32.totalorder %s96, %s112
      %p114 = scmp.eq.s32.totalorder %s20, 0
      %p115 = por %p113, %p114
      %p116 = scmp.le.s32.totalorder 1, %s14
      %p117 = scmp.lt.s32.totalorder %s14, 3
      %p118 = pnand %p116, %p117
      %p119 = pneg %p118
      // Predicated region
      $region9: #{nn_forward.1} parent=5 // pred_check
        _
      $region10: #{nn_forward.1} parent=5 // pred_check_branch
        %121 = sbr.rel (%p118) target = $region12
      $region11: #{nn_forward.1} parent=5 // pred_region
        %s122 = ssub.s32 %s14, 1
        // Predicated region
        $region13: #{nn_forward.1} parent=11 // pred_check
          %p123 = pneg %p61
        $region14: #{nn_forward.1} parent=11 // pred_check_branch
          %125 = sbr.rel (%p123) target = $region16
        $region15: #{nn_forward.1} parent=11 // pred_region
          %s127 = ssub.s32 32, 32
          %128 = vsyncadd [#allocation4], %s127
          %s130 = sshll.u32 %s1, 4
          %s131 = int_to_ptr.vmem [resolvable:$true] %s130
          %133 = dma.vmem_to_smem %s131, 32, [#allocation2], [#allocation4]
        $region16: #{nn_forward.1} parent=11 // pred_fallthru
          _
        // Predicated region
        $region17: #{nn_forward.1} parent=11 // pred_check
          %p134 = pneg %p82
        $region18: #{nn_forward.1} parent=11 // pred_check_branch
          %136 = sbr.rel (%p134) target = $region20
        $region19: #{nn_forward.1} parent=11 // pred_region
          %s138 = ssub.s32 32, 32
          %139 = vsyncadd [#allocation6], %s138
          %s141 = sshll.u32 %s2, 4
          %s142 = int_to_ptr.vmem [resolvable:$true] %s141
          %144 = dma.vmem_to_smem %s142, 32, [#allocation5], [#allocation6]
        $region20: #{nn_forward.1} parent=11 // pred_fallthru
          _
      $region12: #{nn_forward.1} parent=5 // pred_fallthru
        _
      %p145 = scmp.lt.s32.totalorder %s14, 2
      // Predicated region
      $region21: #{nn_forward.1} parent=5 // pred_check
        %p146 = pneg %p145
      $region22: #{nn_forward.1} parent=5 // pred_check_branch
        %148 = sbr.rel (%p146) target = $region24
      $region23: #{nn_forward.1} parent=5 // pred_region
        // Predicated region
        $region25: #{nn_forward.1} parent=23 // pred_check
          %p149 = pneg %p34
        $region26: #{nn_forward.1} parent=23 // pred_check_branch
          %151 = sbr.rel (%p149) target = $region28
        $region27: #{nn_forward.1} parent=23 // pred_region
          %p152 = scmp.lt.s32.totalorder %s14, 1
          %s153 = scalar_select %p152, %s14, 1
          %s154 = scalar_lea.vmem %s0, %s153
        $region28: #{nn_forward.1} parent=23 // pred_fallthru
          _
      $region24: #{nn_forward.1} parent=5 // pred_fallthru
        _
      %p155 = scmp.le.s32.totalorder 1, %s14
      %p156 = scmp.lt.s32.totalorder %s14, 3
      %p157 = pnand %p155, %p156
      %p158 = pneg %p157
      // Predicated region
      $region29: #{nn_forward.1} parent=5 // pred_check
        _
      $region30: #{nn_forward.1} parent=5 // pred_check_branch
        %160 = sbr.rel (%p157) target = $region32
      $region31: #{nn_forward.1} parent=5 // pred_region
        %s161 = ssub.s32 %s14, 1
        // Predicated region
        $region33: #{nn_forward.1} parent=31 // pred_check
          %p162 = pneg %p61
        $region34: #{nn_forward.1} parent=31 // pred_check_branch
          %164 = sbr.rel (%p162) target = $region36
        $region35: #{nn_forward.1} parent=31 // pred_region
          %165 = dma.done [#allocation4], 32
        $region36: #{nn_forward.1} parent=31 // pred_fallthru
          _
        // Predicated region
        $region37: #{nn_forward.1} parent=31 // pred_check
          %p166 = pneg %p82
        $region38: #{nn_forward.1} parent=31 // pred_check_branch
          %168 = sbr.rel (%p166) target = $region40
        $region39: #{nn_forward.1} parent=31 // pred_region
          %169 = dma.done [#allocation6], 32
        $region40: #{nn_forward.1} parent=31 // pred_fallthru
          _
        %170 = sfence
        %p171 = scmp.lt.s32.totalorder %s19, 1
        %s172 = scalar_select %p171, %s19, 1
        %s173 = scalar_lea.vmem %s0, %s172
        %p174 = pneg %p40
        %p175 = pneg %p37
        %p176 = pneg %p61
        %p177 = pneg %p58
        %p178 = pneg %p82
        %p179 = pneg %p79
        %p180 = pneg %p108
        %p181 = pneg %p105
        %s182 = sand.u32 %s95, 1
        %s183 = scalar_lea.sflag [#allocation3], %s182
        %s184 = sand.u32 %s95, 1
        %s185 = smul.addr %s184, 2
        %s186 = scalar_lea.vmem [#allocation7], %s185
        %p187 = scmp.lt.s32.totalorder %s19, 1
        %s188 = scalar_select %p187, %s19, 1
        %s189 = scalar_lea.vmem %s0, %s188
        %v190 = vld [vmem:[%s189] sm:$0x1]
        %s191 = sld [smem:[#allocation2]]
        %v192 = vstv %s191
        %v193 = vmul.f32 %v192, %v190
        %v194 = vmax.f32 %v193, 0.0
        %s195 = sld [smem:[#allocation2 + $0x80]]
        %v196 = vstv %s195
        %v197 = vmul.f32 %v196, %v190
        %v198 = vmax.f32 %v197, 0.0
        %s199 = sld [smem:[#allocation5]]
        %v200 = vstv %s199
        %v201 = vmul.f32 %v200, %v194
        %s202 = sld [smem:[#allocation5 + $0x1]]
        %v203 = vstv %s202
        %v204 = vmul.f32 %v203, %v198
        %v205 = vadd.f32 %v201, %v204
        %s206 = sld [smem:[#allocation5 + $0x80]]
        %v207 = vstv %s206
        %v208 = vmul.f32 %v207, %v194
        %s209 = sld [smem:[#allocation5 + $0x81]]
        %v210 = vstv %s209
        %v211 = vmul.f32 %v210, %v198
        %v212 = vadd.f32 %v208, %v211
        %v214 = vlaneseq
        %v215 = vshrl.u32 %v214, 7
        %v216 = vsub.s32 0, %v215
        %v217 = vrot.slane %v212, %v216
        %vm219 = vcmask 1040384
        %v220 = vsel %vm219, %v205, %v217
        %221 = vst [vmem:[%s186] sm:$0x3] %v220
        %s222 = sand.u32 %s95, 1
        %s223 = scalar_lea.sflag [#allocation3], %s222
        %s224 = sand.u32 %s95, 1
        %s225 = smul.addr %s224, 2
        %s226 = scalar_lea.vmem [#allocation7], %s225
        // Predicated region
        $region41: #{nn_forward.1} parent=31 // pred_check
          %p227 = pneg %p105
        $region42: #{nn_forward.1} parent=31 // pred_check_branch
          %229 = sbr.rel (%p227) target = $region44
        $region43: #{nn_forward.1} parent=31 // pred_region
          %s231 = ssub.s32 32, 32
          %232 = vsyncadd %s223, %s231
          %s233 = smul.addr %s19, 32
          %s234 = scalar_lea.hbm %s3, %s233
          %s236 = sshll.u32 %s226, 4
          %s237 = int_to_ptr.vmem [resolvable:$true] %s236
          %239 = dma.vmem_to_hbm [thread:$0]  %s237, 32, %s234, %s223
        $region44: #{nn_forward.1} parent=31 // pred_fallthru
          _
      $region32: #{nn_forward.1} parent=5 // pred_fallthru
        _
      %p240 = scmp.le.s32.totalorder 2, %s14
      // Predicated region
      $region45: #{nn_forward.1} parent=5 // pred_check
        %p241 = pneg %p240
      $region46: #{nn_forward.1} parent=5 // pred_check_branch
        %243 = sbr.rel (%p241) target = $region48
      $region47: #{nn_forward.1} parent=5 // pred_region
        %s244 = ssub.s32 %s14, 2
        // Predicated region
        $region49: #{nn_forward.1} parent=47 // pred_check
          %p245 = pneg %p111
        $region50: #{nn_forward.1} parent=47 // pred_check_branch
          %247 = sbr.rel (%p245) target = $region52
        $region51: #{nn_forward.1} parent=47 // pred_region
          %s248 = sand.u32 %s96, 1
          %s249 = scalar_lea.sflag [#allocation3], %s248
          %s250 = sand.u32 %s96, 1
          %s251 = smul.addr %s250, 2
          %s252 = scalar_lea.vmem [#allocation7], %s251
          %253 = dma.done %s249, 32
        $region52: #{nn_forward.1} parent=47 // pred_fallthru
          _
      $region48: #{nn_forward.1} parent=5 // pred_fallthru
        _
    $region6: #{nn_forward.1} parent=1 // loop_footer
      %s18 = sadd.s32 1, %s14
    $region7: #{nn_forward.1} parent=1 // loop_footer_branch
      %13 = sbr.rel target = $region3
    $region8: #{nn_forward.1} parent=1 // loop_exit
      _
    %254 = vsyncpa [#allocation3], 1
    %s255 = scalar_lea.sflag [#allocation3], 1
    %256 = vsyncpa %s255, 1
    %257 = vsyncpa [#allocation4], 1
    %s258 = scalar_lea.sflag [#allocation4], 1
    %259 = vsyncpa %s258, 1
    %260 = vsyncpa [#allocation6], 1

</llo_original>
